<compile_context>
chip_gen: v6e
topology: v6e:2x2x1
jax: 0.10.0
libtpu: 0.0.40
codegen_flags: <defaults>
</compile_context>

<pallas_src>
import functools

import jax
import jax.numpy as jnp
from jax.experimental import pallas as pl
from jax.experimental.pallas import tpu as pltpu


def _gcn_fused_kernel(xt_ref, adj_ref, *rest, num_layers):
    """Fused, transposed GCN forward.

    Argument order: x^T, A_hat, W_1^T, b_1, ..., W_L^T, b_L, out^T.
    All refs are full-array VMEM blocks; intermediates never touch HBM.
    """
    o_ref = rest[-1]
    wb_refs = rest[:-1]
    assert len(wb_refs) == 2 * num_layers

    # Cast the (dominant, f32-in-HBM) adjacency to bf16 once, in VMEM.
    a = adj_ref[...].astype(jnp.bfloat16)       # [N, N]
    ht = xt_ref[...]                            # [F_in, N] f32, node axis on lanes

    for layer in range(num_layers):
        wt = wb_refs[2 * layer][...]            # [F_out_l, F_in_l] f32
        b = wb_refs[2 * layer + 1][...]         # [F_out_l, 1]      f32

        # Transform (tiny matmul): bf16 MXU operands, f32 accumulation.
        t = jnp.dot(wt.astype(jnp.bfloat16), ht.astype(jnp.bfloat16),
                    preferred_element_type=jnp.float32)           # [F_out, N]

        # Aggregate over symmetric A_hat (the big, lane-dense matmul);
        # bias broadcasts over the lane (node) axis — matches PyG GCNConv.
        t = jnp.dot(t.astype(jnp.bfloat16), a,
                    preferred_element_type=jnp.float32) + b       # [F_out, N]

        if layer < num_layers - 1:
            t = jnp.maximum(t, 0.0)             # ReLU
            # dropout: identity (eval mode) -- see TODO(synk) at top.
        ht = t

    o_ref[...] = ht.astype(o_ref.dtype)         # [out_channels, N], lane-dense store


def gcn_forward(params, x, adj_hat):
    """Mirrors GCN.forward: conv -> relu -> dropout for all but the last layer.

    Returns [N, out_channels] like the PyTorch module (internal compute is
    transposed; the final 8 KiB transpose back is negligible layout plumbing).
    """
    num_layers = len(params)
    n_nodes = x.shape[0]
    out_channels = params[-1]["W"].shape[1]

    # Layout plumbing only (tiny arrays): put the node axis on lanes.
    xt = x.astype(jnp.float32).T                                   # [F_in, N]
    flat = []
    for p in params:
        flat.append(p["W"].astype(jnp.float32).T)                  # [F_out, F_in]
        flat.append(p["b"].astype(jnp.float32).reshape(-1, 1))     # [F_out, 1]

    vmem_spec = pl.BlockSpec(memory_space=pltpu.MemorySpace.VMEM)
    kernel = functools.partial(_gcn_fused_kernel, num_layers=num_layers)

    out_t = pl.pallas_call(
        kernel,
        out_shape=jax.ShapeDtypeStruct((out_channels, n_nodes), jnp.float32),
        in_specs=[vmem_spec] * (2 + 2 * num_layers),
        out_specs=vmem_spec,
        compiler_params=pltpu.CompilerParams(
            # Explicit scoped-VMEM budget; 32 MiB is safe on v5e/v6e/v7x and
            # far above the ~300 KiB this problem needs.
            vmem_limit_bytes=32 * 1024 * 1024,
        ),
    )(xt, adj_hat.astype(jnp.float32), *flat)

    return out_t.T                                                 # [N, out_channels]


# ----------------------------- GCN model glue -----------------------------

def glorot(key, shape):
    fan_in, fan_out = shape
    limit = jnp.sqrt(6.0 / (fan_in + fan_out))
    return jax.random.uniform(key, shape, jnp.float32, -limit, limit)


def init_gcn_params(key, in_channels, hidden_channels, out_channels, num_layers):
    dims = [in_channels] + [hidden_channels] * (num_layers - 1) + [out_channels]
    params = []
    keys = jax.random.split(key, num_layers)
    for k, (fi, fo) in zip(keys, zip(dims[:-1], dims[1:])):
        params.append({
            "W": glorot(k, (fi, fo)),
            "b": jnp.zeros((fo,), jnp.float32),
        })
    return params


def normalize_adj(adj):
    """A_hat = D^{-1/2} (A + I) D^{-1/2} (GCNConv default normalization)."""
    n = adj.shape[0]
    a = adj + jnp.eye(n, dtype=adj.dtype)
    deg = a.sum(axis=1)
    d_inv_sqrt = jax.lax.rsqrt(jnp.maximum(deg, 1e-12))
    return a * d_inv_sqrt[:, None] * d_inv_sqrt[None, :]


def gcn_forward_ref(params, x, adj_hat):
    """Pure-JAX f32 reference for correctness checking."""
    num_layers = len(params)
    h = x
    for layer_idx, p in enumerate(params):
        h = adj_hat @ (h @ p["W"]) + p["b"][None, :]
        if layer_idx < num_layers - 1:
            h = jnp.maximum(h, 0.0)
    return h


if __name__ == "__main__":
    key = jax.random.PRNGKey(0)
    k_x, k_adj, k_p = jax.random.split(key, 3)

    n_nodes = 256
    in_channels, hidden_channels, out_channels = 16, 32, 8
    num_layers, dropout = 3, 0.5

    # Node features.
    x = jax.random.normal(k_x, (n_nodes, in_channels), jnp.float32)

    # Random symmetric adjacency (no self edges; normalization adds them).
    rand = (jax.random.uniform(k_adj, (n_nodes, n_nodes)) < 0.05).astype(jnp.float32)
    adj = jnp.maximum(rand, rand.T) * (1.0 - jnp.eye(n_nodes, dtype=jnp.float32))
    adj_hat = normalize_adj(adj)   # symmetric by construction

    params = init_gcn_params(k_p, in_channels, hidden_channels, out_channels,
                             num_layers)

    out = gcn_forward(params, x, adj_hat)
    jax.block_until_ready(out)
    assert out.shape == (n_nodes, out_channels), out.shape

    # Loose tolerance check against the f32 reference (bf16 MXU path).
    ref = gcn_forward_ref(params, x, adj_hat)
    max_err = float(jnp.max(jnp.abs(out - ref)))
    scale = float(jnp.max(jnp.abs(ref))) + 1e-6
    assert max_err <= 0.05 * scale + 1e-3, (max_err, scale)

    print("KERNEL_OK")
</pallas_src>

<mosaic_0001>
module attributes {stable_mosaic.version = 11 : i64} {
  func.func @_gcn_fused_kernel(%arg0: memref<16x256xf32, #tpu.memory_space<vmem>>, %arg1: memref<256x256xf32, #tpu.memory_space<vmem>>, %arg2: memref<32x16xf32, #tpu.memory_space<vmem>>, %arg3: memref<32x1xf32, #tpu.memory_space<vmem>>, %arg4: memref<32x32xf32, #tpu.memory_space<vmem>>, %arg5: memref<32x1xf32, #tpu.memory_space<vmem>>, %arg6: memref<8x32xf32, #tpu.memory_space<vmem>>, %arg7: memref<8x1xf32, #tpu.memory_space<vmem>>, %arg8: memref<8x256xf32, #tpu.memory_space<vmem>>) attributes {dimension_semantics = [], scalar_prefetch = 0 : i64, scratch_operands = 0 : i64, tpu.core_type = #tpu.core_type<tc>} {
    %c0 = arith.constant 0 : index
    %c0_0 = arith.constant 0 : index
    %0 = vector.load %arg1[%c0, %c0_0] : memref<256x256xf32, #tpu.memory_space<vmem>>, vector<256x256xf32>
    %1 = arith.truncf %0 : vector<256x256xf32> to vector<256x256xbf16>
    %c0_1 = arith.constant 0 : index
    %c0_2 = arith.constant 0 : index
    %2 = vector.load %arg0[%c0_1, %c0_2] : memref<16x256xf32, #tpu.memory_space<vmem>>, vector<16x256xf32>
    %c0_3 = arith.constant 0 : index
    %c0_4 = arith.constant 0 : index
    %3 = vector.load %arg2[%c0_3, %c0_4] : memref<32x16xf32, #tpu.memory_space<vmem>>, vector<32x16xf32>
    %c0_5 = arith.constant 0 : index
    %c0_6 = arith.constant 0 : index
    %4 = vector.load %arg3[%c0_5, %c0_6] : memref<32x1xf32, #tpu.memory_space<vmem>>, vector<32x1xf32>
    %5 = arith.truncf %3 : vector<32x16xf32> to vector<32x16xbf16>
    %6 = arith.truncf %2 : vector<16x256xf32> to vector<16x256xbf16>
    %cst = arith.constant dense<0.000000e+00> : vector<32x256xf32>
    %7 = tpu.matmul %5, %6, %cst {dimension_numbers = #tpu.dot_dimension_numbers<[1], [0], [0], [1], [0, 0, 1, 1], [], []>} : vector<32x16xbf16>, vector<16x256xbf16>, vector<32x256xf32> -> vector<32x256xf32>
    %8 = arith.truncf %7 : vector<32x256xf32> to vector<32x256xbf16>
    %cst_7 = arith.constant dense<0.000000e+00> : vector<32x256xf32>
    %9 = tpu.matmul %8, %1, %cst_7 {dimension_numbers = #tpu.dot_dimension_numbers<[1], [0], [0], [1], [0, 0, 1, 1], [], []>} : vector<32x256xbf16>, vector<256x256xbf16>, vector<32x256xf32> -> vector<32x256xf32>
    %10 = vector.broadcast %4 : vector<32x1xf32> to vector<32x256xf32>
    %11 = arith.addf %9, %10 : vector<32x256xf32>
    %cst_8 = arith.constant 0.000000e+00 : f32
    %12 = vector.broadcast %cst_8 : f32 to vector<32x256xf32>
    %13 = arith.maximumf %11, %12 : vector<32x256xf32>
    %c0_9 = arith.constant 0 : index
    %c0_10 = arith.constant 0 : index
    %14 = vector.load %arg4[%c0_9, %c0_10] : memref<32x32xf32, #tpu.memory_space<vmem>>, vector<32x32xf32>
    %c0_11 = arith.constant 0 : index
    %c0_12 = arith.constant 0 : index
    %15 = vector.load %arg5[%c0_11, %c0_12] : memref<32x1xf32, #tpu.memory_space<vmem>>, vector<32x1xf32>
    %16 = arith.truncf %14 : vector<32x32xf32> to vector<32x32xbf16>
    %17 = arith.truncf %13 : vector<32x256xf32> to vector<32x256xbf16>
    %cst_13 = arith.constant dense<0.000000e+00> : vector<32x256xf32>
    %18 = tpu.matmul %16, %17, %cst_13 {dimension_numbers = #tpu.dot_dimension_numbers<[1], [0], [0], [1], [0, 0, 1, 1], [], []>} : vector<32x32xbf16>, vector<32x256xbf16>, vector<32x256xf32> -> vector<32x256xf32>
    %19 = arith.truncf %18 : vector<32x256xf32> to vector<32x256xbf16>
    %cst_14 = arith.constant dense<0.000000e+00> : vector<32x256xf32>
    %20 = tpu.matmul %19, %1, %cst_14 {dimension_numbers = #tpu.dot_dimension_numbers<[1], [0], [0], [1], [0, 0, 1, 1], [], []>} : vector<32x256xbf16>, vector<256x256xbf16>, vector<32x256xf32> -> vector<32x256xf32>
    %21 = vector.broadcast %15 : vector<32x1xf32> to vector<32x256xf32>
    %22 = arith.addf %20, %21 : vector<32x256xf32>
    %cst_15 = arith.constant 0.000000e+00 : f32
    %23 = vector.broadcast %cst_15 : f32 to vector<32x256xf32>
    %24 = arith.maximumf %22, %23 : vector<32x256xf32>
    %c0_16 = arith.constant 0 : index
    %c0_17 = arith.constant 0 : index
    %25 = vector.load %arg6[%c0_16, %c0_17] : memref<8x32xf32, #tpu.memory_space<vmem>>, vector<8x32xf32>
    %c0_18 = arith.constant 0 : index
    %c0_19 = arith.constant 0 : index
    %26 = vector.load %arg7[%c0_18, %c0_19] : memref<8x1xf32, #tpu.memory_space<vmem>>, vector<8x1xf32>
    %27 = arith.truncf %25 : vector<8x32xf32> to vector<8x32xbf16>
    %28 = arith.truncf %24 : vector<32x256xf32> to vector<32x256xbf16>
    %cst_20 = arith.constant dense<0.000000e+00> : vector<8x256xf32>
    %29 = tpu.matmul %27, %28, %cst_20 {dimension_numbers = #tpu.dot_dimension_numbers<[1], [0], [0], [1], [0, 0, 1, 1], [], []>} : vector<8x32xbf16>, vector<32x256xbf16>, vector<8x256xf32> -> vector<8x256xf32>
    %30 = arith.truncf %29 : vector<8x256xf32> to vector<8x256xbf16>
    %cst_21 = arith.constant dense<0.000000e+00> : vector<8x256xf32>
    %31 = tpu.matmul %30, %1, %cst_21 {dimension_numbers = #tpu.dot_dimension_numbers<[1], [0], [0], [1], [0, 0, 1, 1], [], []>} : vector<8x256xbf16>, vector<256x256xbf16>, vector<8x256xf32> -> vector<8x256xf32>
    %32 = vector.broadcast %26 : vector<8x1xf32> to vector<8x256xf32>
    %33 = arith.addf %31, %32 : vector<8x256xf32>
    %c0_22 = arith.constant 0 : index
    %c0_23 = arith.constant 0 : index
    %34 = vector.load %arg8[%c0_22, %c0_23] : memref<8x256xf32, #tpu.memory_space<vmem>>, vector<8x256xf32>
    tpu.vector_store %arg8[%c0_22, %c0_23], %33 {strides = array<i32>} : memref<8x256xf32, #tpu.memory_space<vmem>>, vector<8x256xf32>,
    return
  }
}

</mosaic_0001>

<llo_original>
// kernel: tpu_custom_call.1
$region0: #{tpu_custom_call.1}
  #allocation0 [shape = 'u32[]', space=smem, size = 0x4, offset = 0x4, fixed_abs, tag = 'smem constant byte address 0x4 - core index']
  #allocation1 [shape = 'u32[144,128]{1,0:T(1,128)}', space=vmem, size = 0x12000, scoped, tag = 'internal scratch']
  %s0 = inlined_call_operand.vmem [shape: f32[16,256], index: 0, kind: input, shape index: {}]
  %s1 = inlined_call_operand.hbm [shape: f32[256,256], index: 1, kind: input, shape index: {}]
  %s2 = inlined_call_operand.vmem [shape: f32[32,16], index: 2, kind: input, shape index: {}]
  %s3 = inlined_call_operand.vmem [shape: f32[32,1], index: 3, kind: input, shape index: {}]
  %s4 = inlined_call_operand.vmem [shape: f32[32,32], index: 4, kind: input, shape index: {}]
  %s5 = inlined_call_operand.vmem [shape: f32[32,1], index: 5, kind: input, shape index: {}]
  %s6 = inlined_call_operand.vmem [shape: f32[8,32], index: 6, kind: input, shape index: {}]
  %s7 = inlined_call_operand.vmem [shape: f32[8,1], index: 7, kind: input, shape index: {}]
  %s8 = inlined_call_operand.hbm [shape: f32[8,256], index: 8, kind: output, shape index: {}]
  %s9 = sld [smem:[#allocation0]]
  $region46: #{tpu_custom_call.1} parent=0
    _
  %s11 = ssub.s32 1, %s9
  %s12 = scalar_select 0, %s11, %s9
  $region1: #{tpu_custom_call.1} parent=0
    #allocation2 [shape = 'u8[262144]{0}', space=vmem, size = 0x40000, scoped, tag = 'input window, operand 1, single buffered']
    #allocation3 [shape = 's32[1]{0}', space=sflag, size = 0x4, scoped, tag = 'scoped memory for tpu_custom_call.1']
    #allocation4 [shape = 's32[1]{0}', space=sflag, size = 0x4, scoped, tag = 'scoped memory for tpu_custom_call.1']
    #allocation5 [shape = 'u8[8192]{0}', space=vmem, size = 0x2000, scoped, tag = 'output window, operand 0, single buffered']
    %13 = vsyncpa [#allocation3], 0
    %14 = vsyncpa [#allocation4], 0
    // Predicated region
    $region2: #{tpu_custom_call.1} parent=1 // pred_check
      _
    $region3: #{tpu_custom_call.1} parent=1 // pred_check_branch
      %16 = sbr.rel (0) target = $region5
    $region4: #{tpu_custom_call.1} parent=1 // pred_region
      _
    $region5: #{tpu_custom_call.1} parent=1 // pred_fallthru
      _
    // Predicated region
    $region6: #{tpu_custom_call.1} parent=1 // pred_check
      _
    $region7: #{tpu_custom_call.1} parent=1 // pred_check_branch
      %18 = sbr.rel (0) target = $region9
    $region8: #{tpu_custom_call.1} parent=1 // pred_region
      %s20 = ssub.s32 8192, 8192
      %21 = vsyncadd [#allocation3], %s20
      %s22 = sshll.u32 [#allocation2], 4
      %s23 = int_to_ptr.vmem [resolvable:$true] %s22
      %28 = dma.hbm_to_vmem [thread:$0]  %s1, 8192, %s23, [#allocation3], 256, 256, 16
    $region9: #{tpu_custom_call.1} parent=1 // pred_fallthru
      _
    // Predicated region
    $region10: #{tpu_custom_call.1} parent=1 // pred_check
      _
    $region11: #{tpu_custom_call.1} parent=1 // pred_check_branch
      %30 = sbr.rel (0) target = $region13
    $region12: #{tpu_custom_call.1} parent=1 // pred_region
      _
    $region13: #{tpu_custom_call.1} parent=1 // pred_fallthru
      _
    // Predicated region
    $region14: #{tpu_custom_call.1} parent=1 // pred_check
      _
    $region15: #{tpu_custom_call.1} parent=1 // pred_check_branch
      %32 = sbr.rel (0) target = $region17
    $region16: #{tpu_custom_call.1} parent=1 // pred_region
      _
    $region17: #{tpu_custom_call.1} parent=1 // pred_fallthru
      _
    // Predicated region
    $region18: #{tpu_custom_call.1} parent=1 // pred_check
      _
    $region19: #{tpu_custom_call.1} parent=1 // pred_check_branch
      %34 = sbr.rel (0) target = $region21
    $region20: #{tpu_custom_call.1} parent=1 // pred_region
      _
    $region21: #{tpu_custom_call.1} parent=1 // pred_fallthru
      _
    // Predicated region
    $region22: #{tpu_custom_call.1} parent=1 // pred_check
      _
    $region23: #{tpu_custom_call.1} parent=1 // pred_check_branch
      %36 = sbr.rel (0) target = $region25
    $region24: #{tpu_custom_call.1} parent=1 // pred_region
      _
    $region25: #{tpu_custom_call.1} parent=1 // pred_fallthru
      _
    // Predicated region
    $region26: #{tpu_custom_call.1} parent=1 // pred_check
      _
    $region27: #{tpu_custom_call.1} parent=1 // pred_check_branch
      %38 = sbr.rel (0) target = $region29
    $region28: #{tpu_custom_call.1} parent=1 // pred_region
      _
    $region29: #{tpu_custom_call.1} parent=1 // pred_fallthru
      _
    // Predicated region
    $region30: #{tpu_custom_call.1} parent=1 // pred_check
      _
    $region31: #{tpu_custom_call.1} parent=1 // pred_check_branch
      %40 = sbr.rel (0) target = $region33
    $region32: #{tpu_custom_call.1} parent=1 // pred_region
      _
    $region33: #{tpu_custom_call.1} parent=1 // pred_fallthru
      _
    // Predicated region
    $region34: #{tpu_custom_call.1} parent=1 // pred_check
      _
    $region35: #{tpu_custom_call.1} parent=1 // pred_check_branch
      %42 = sbr.rel (0) target = $region37
    $region36: #{tpu_custom_call.1} parent=1 // pred_region
      %43 = dma.done [#allocation3], 8192
    $region37: #{tpu_custom_call.1} parent=1 // pred_fallthru
      _
    %v45 = vld [vmem:[#allocation2] sm:$0xff]
    %v46 = vld [vmem:[#allocation2 + $0x8] sm:$0xff]
    %v47 = vld [vmem:[#allocation2 + $0x10] sm:$0xff]
    %v48 = vld [vmem:[#allocation2 + $0x18] sm:$0xff]
    %v49 = vld [vmem:[#allocation2 + $0x20] sm:$0xff]
    %v50 = vld [vmem:[#allocation2 + $0x28] sm:$0xff]
    %v51 = vld [vmem:[#allocation2 + $0x30] sm:$0xff]
    %v52 = vld [vmem:[#allocation2 + $0x38] sm:$0xff]
    %v53 = vld [vmem:[#allocation2 + $0x40] sm:$0xff]
    %v54 = vld [vmem:[#allocation2 + $0x48] sm:$0xff]
    %v55 = vld [vmem:[#allocation2 + $0x50] sm:$0xff]
    %v56 = vld [vmem:[#allocation2 + $0x58] sm:$0xff]
    %v57 = vld [vmem:[#allocation2 + $0x60] sm:$0xff]
    %v58 = vld [vmem:[#allocation2 + $0x68] sm:$0xff]
    %v59 = vld [vmem:[#allocation2 + $0x70] sm:$0xff]
    %v60 = vld [vmem:[#allocation2 + $0x78] sm:$0xff]
    %v61 = vld [vmem:[#allocation2 + $0x80] sm:$0xff]
    %v62 = vld [vmem:[#allocation2 + $0x88] sm:$0xff]
    %v63 = vld [vmem:[#allocation2 + $0x90] sm:$0xff]
    %v64 = vld [vmem:[#allocation2 + $0x98] sm:$0xff]
    %v65 = vld [vmem:[#allocation2 + $0xa0] sm:$0xff]
    %v66 = vld [vmem:[#allocation2 + $0xa8] sm:$0xff]
    %v67 = vld [vmem:[#allocation2 + $0xb0] sm:$0xff]
    %v68 = vld [vmem:[#allocation2 + $0xb8] sm:$0xff]
    %v69 = vld [vmem:[#allocation2 + $0xc0] sm:$0xff]
    %v70 = vld [vmem:[#allocation2 + $0xc8] sm:$0xff]
    %v71 = vld [vmem:[#allocation2 + $0xd0] sm:$0xff]
    %v72 = vld [vmem:[#allocation2 + $0xd8] sm:$0xff]
    %v73 = vld [vmem:[#allocation2 + $0xe0] sm:$0xff]
    %v74 = vld [vmem:[#allocation2 + $0xe8] sm:$0xff]
    %v75 = vld [vmem:[#allocation2 + $0xf0] sm:$0xff]
    %v76 = vld [vmem:[#allocation2 + $0xf8] sm:$0xff]
    %v77 = vld [vmem:[#allocation2 + $0x100] sm:$0xff]
    %v78 = vld [vmem:[#allocation2 + $0x108] sm:$0xff]
    %v79 = vld [vmem:[#allocation2 + $0x110] sm:$0xff]
    %v80 = vld [vmem:[#allocation2 + $0x118] sm:$0xff]
    %v81 = vld [vmem:[#allocation2 + $0x120] sm:$0xff]
    %v82 = vld [vmem:[#allocation2 + $0x128] sm:$0xff]
    %v83 = vld [vmem:[#allocation2 + $0x130] sm:$0xff]
    %v84 = vld [vmem:[#allocation2 + $0x138] sm:$0xff]
    %v85 = vld [vmem:[#allocation2 + $0x140] sm:$0xff]
    %v86 = vld [vmem:[#allocation2 + $0x148] sm:$0xff]
    %v87 = vld [vmem:[#allocation2 + $0x150] sm:$0xff]
    %v88 = vld [vmem:[#allocation2 + $0x158] sm:$0xff]
    %v89 = vld [vmem:[#allocation2 + $0x160] sm:$0xff]
    %v90 = vld [vmem:[#allocation2 + $0x168] sm:$0xff]
    %v91 = vld [vmem:[#allocation2 + $0x170] sm:$0xff]
    %v92 = vld [vmem:[#allocation2 + $0x178] sm:$0xff]
    %v93 = vld [vmem:[#allocation2 + $0x180] sm:$0xff]
    %v94 = vld [vmem:[#allocation2 + $0x188] sm:$0xff]
    %v95 = vld [vmem:[#allocation2 + $0x190] sm:$0xff]
    %v96 = vld [vmem:[#allocation2 + $0x198] sm:$0xff]
    %v97 = vld [vmem:[#allocation2 + $0x1a0] sm:$0xff]
    %v98 = vld [vmem:[#allocation2 + $0x1a8] sm:$0xff]
    %v99 = vld [vmem:[#allocation2 + $0x1b0] sm:$0xff]
    %v100 = vld [vmem:[#allocation2 + $0x1b8] sm:$0xff]
    %v101 = vld [vmem:[#allocation2 + $0x1c0] sm:$0xff]
    %v102 = vld [vmem:[#allocation2 + $0x1c8] sm:$0xff]
    %v103 = vld [vmem:[#allocation2 + $0x1d0] sm:$0xff]
    %v104 = vld [vmem:[#allocation2 + $0x1d8] sm:$0xff]
    %v105 = vld [vmem:[#allocation2 + $0x1e0] sm:$0xff]
    %v106 = vld [vmem:[#allocation2 + $0x1e8] sm:$0xff]
    %v107 = vld [vmem:[#allocation2 + $0x1f0] sm:$0xff]
    %v108 = vld [vmem:[#allocation2 + $0x1f8] sm:$0xff]
    %v109 = vpack.c.bf16 %v47, %v45
    %v110 = vpack.c.bf16 %v48, %v46
    %v111 = vpack.c.bf16 %v51, %v49
    %v112 = vpack.c.bf16 %v52, %v50
    %v113 = vpack.c.bf16 %v55, %v53
    %v114 = vpack.c.bf16 %v56, %v54
    %v115 = vpack.c.bf16 %v59, %v57
    %v116 = vpack.c.bf16 %v60, %v58
    %v117 = vpack.c.bf16 %v63, %v61
    %v118 = vpack.c.bf16 %v64, %v62
    %v119 = vpack.c.bf16 %v67, %v65
    %v120 = vpack.c.bf16 %v68, %v66
    %v121 = vpack.c.bf16 %v71, %v69
    %v122 = vpack.c.bf16 %v72, %v70
    %v123 = vpack.c.bf16 %v75, %v73
    %v124 = vpack.c.bf16 %v76, %v74
    %v125 = vpack.c.bf16 %v79, %v77
    %v126 = vpack.c.bf16 %v80, %v78
    %v127 = vpack.c.bf16 %v83, %v81
    %v128 = vpack.c.bf16 %v84, %v82
    %v129 = vpack.c.bf16 %v87, %v85
    %v130 = vpack.c.bf16 %v88, %v86
    %v131 = vpack.c.bf16 %v91, %v89
    %v132 = vpack.c.bf16 %v92, %v90
    %v133 = vpack.c.bf16 %v95, %v93
    %v134 = vpack.c.bf16 %v96, %v94
    %v135 = vpack.c.bf16 %v99, %v97
    %v136 = vpack.c.bf16 %v100, %v98
    %v137 = vpack.c.bf16 %v103, %v101
    %v138 = vpack.c.bf16 %v104, %v102
    %v139 = vpack.c.bf16 %v107, %v105
    %v140 = vpack.c.bf16 %v108, %v106
    %v141 = vld [vmem:[%s0] sm:$0xff]
    %v142 = vld [vmem:[%s0 + $0x8] sm:$0xff]
    %v143 = vld [vmem:[%s0 + $0x10] sm:$0xff]
    %v144 = vld [vmem:[%s0 + $0x18] sm:$0xff]
    %v145 = vld [vmem:[%s2] sm:$0xff]
    %v146 = vld [vmem:[%s2 + $0x8] sm:$0xff]
    %v147 = vld [vmem:[%s2 + $0x10] sm:$0xff]
    %v148 = vld [vmem:[%s2 + $0x18] sm:$0xff]
    %v149 = vld [vmem:[%s3] sm:$0xff]
    %v150 = vld [vmem:[%s3 + $0x8] sm:$0xff]
    %v151 = vld [vmem:[%s3 + $0x10] sm:$0xff]
    %v152 = vld [vmem:[%s3 + $0x18] sm:$0xff]
    %v153 = vpack.c.bf16 %v146, %v145
    %v154 = vpack.c.bf16 %v148, %v147
    %v155 = vpack.c.bf16 %v143, %v141
    %v156 = vpack.c.bf16 %v144, %v142
    %vm157 = vcmask 130048
    %v159 = vsel %vm157, %v153, 0
    %v162 = vsel %vm157, %v154, 0
    %164 = vmatprep.subr.bf16.mxu0 0
    %165 = vmatpush1.bf16.msra.mxu0 0
    %166 = vmatprep.subr.bf16.mxu0 0
    %167 = vmatpush1.bf16.msra.mxu0 0
    %168 = vmatprep.subr.bf16.mxu0 0
    %169 = vmatpush1.bf16.msra.mxu0 0
    %170 = vmatprep.subr.bf16.mxu0 0
    %171 = vmatpush1.bf16.msra.mxu0 0
    %172 = vmatprep.subr.bf16.mxu0 0
    %173 = vmatpush1.bf16.msra.mxu0 0
    %174 = vmatprep.subr.bf16.mxu0 0
    %175 = vmatpush1.bf16.msra.mxu0 0
    %176 = vmatprep.subr.bf16.mxu0 0
    %177 = vmatpush1.bf16.msra.mxu0 0
    %178 = vmatprep.subr.bf16.mxu0 %v156
    %179 = vmatpush1.bf16.msra.mxu0 %v155
    %180 = vmatprep.subr.bf16.mxu0 0
    %181 = vmatpush2.bf16.msra.mxu0 0
    %182 = vmatprep.subr.bf16.mxu0 0
    %183 = vmatpush2.bf16.msra.mxu0 0
    %184 = vmatprep.subr.bf16.mxu0 0
    %185 = vmatpush2.bf16.msra.mxu0 0
    %186 = vmatprep.subr.bf16.mxu0 0
    %187 = vmatpush2.bf16.msra.mxu0 0
    %188 = vmatprep.subr.bf16.mxu0 0
    %189 = vmatpush2.bf16.msra.mxu0 0
    %190 = vmatprep.subr.bf16.mxu0 0
    %191 = vmatpush2.bf16.msra.mxu0 0
    %192 = vmatprep.subr.bf16.mxu0 0
    %193 = vmatpush2.bf16.msra.mxu0 0
    %194 = vmatprep.subr.bf16.mxu0 0
    %195 = vmatpush2.bf16.msra.mxu0 0
    %196 = vmatprep.mubr.bf16.mxu0 0
    %197 = vmatmul.mubr.bf16.gmra.mxu0 %v159
    %v198 = vpop.f32.mrf.mxu0
    %v199 = vadd.f32 0.0, %v198
    %v200 = vpop.f32.mrf.mxu0
    %v201 = vadd.f32 0.0, %v200
    %v202 = vpop.f32.mrf.mxu0
    %v203 = vadd.f32 0.0, %v202
    %v204 = vpop.f32.mrf.mxu0
    %v205 = vadd.f32 0.0, %v204
    %206 = vmatprep.mubr.bf16.mxu0 0
    %207 = vmatmul.mubr.bf16.gmra.mxu0 %v162
    %v208 = vpop.f32.mrf.mxu0
    %v209 = vadd.f32 0.0, %v208
    %v210 = vpop.f32.mrf.mxu0
    %v211 = vadd.f32 0.0, %v210
    %v212 = vpop.f32.mrf.mxu0
    %v213 = vadd.f32 0.0, %v212
    %v214 = vpop.f32.mrf.mxu0
    %v215 = vadd.f32 0.0, %v214
    %216 = vdwg.mxu0
    %v217 = vpack.c.bf16 %v203, %v199
    %v218 = vpack.c.bf16 %v205, %v201
    %v219 = vpack.c.bf16 %v213, %v209
    %v220 = vpack.c.bf16 %v215, %v211
    %222 = vset.pattern.permute.xlu0 0
    %223 = vperm.xlu0 %222, %v149
    %v224 = vpop.permute.xlu0 %223
    %227 = vset.pattern.permute.xlu0 0
    %228 = vperm.xlu0 %227, %v150
    %v229 = vpop.permute.xlu0 %228
    %232 = vset.pattern.permute.xlu0 0
    %233 = vperm.xlu0 %232, %v151
    %v234 = vpop.permute.xlu0 %233
    %237 = vset.pattern.permute.xlu0 0
    %238 = vperm.xlu0 %237, %v152
    %v239 = vpop.permute.xlu0 %238
    %241 = vmatprep.subr.bf16.mxu0 %v124
    %242 = vmatpush1.bf16.msra.mxu0 %v123
    %243 = vmatprep.subr.bf16.mxu0 %v122
    %244 = vmatpush1.bf16.msra.mxu0 %v121
    %245 = vmatprep.subr.bf16.mxu0 %v120
    %246 = vmatpush1.bf16.msra.mxu0 %v119
    %247 = vmatprep.subr.bf16.mxu0 %v118
    %248 = vmatpush1.bf16.msra.mxu0 %v117
    %249 = vmatprep.subr.bf16.mxu0 %v116
    %250 = vmatpush1.bf16.msra.mxu0 %v115
    %251 = vmatprep.subr.bf16.mxu0 %v114
    %252 = vmatpush1.bf16.msra.mxu0 %v113
    %253 = vmatprep.subr.bf16.mxu0 %v112
    %254 = vmatpush1.bf16.msra.mxu0 %v111
    %255 = vmatprep.subr.bf16.mxu0 %v110
    %256 = vmatpush1.bf16.msra.mxu0 %v109
    %257 = vmatprep.subr.bf16.mxu0 %v140
    %258 = vmatpush2.bf16.msra.mxu0 %v139
    %259 = vmatprep.subr.bf16.mxu0 %v138
    %260 = vmatpush2.bf16.msra.mxu0 %v137
    %261 = vmatprep.subr.bf16.mxu0 %v136
    %262 = vmatpush2.bf16.msra.mxu0 %v135
    %263 = vmatprep.subr.bf16.mxu0 %v134
    %264 = vmatpush2.bf16.msra.mxu0 %v133
    %265 = vmatprep.subr.bf16.mxu0 %v132
    %266 = vmatpush2.bf16.msra.mxu0 %v131
    %267 = vmatprep.subr.bf16.mxu0 %v130
    %268 = vmatpush2.bf16.msra.mxu0 %v129
    %269 = vmatprep.subr.bf16.mxu0 %v128
    %270 = vmatpush2.bf16.msra.mxu0 %v127
    %271 = vmatprep.subr.bf16.mxu0 %v126
    %272 = vmatpush2.bf16.msra.mxu0 %v125
    %273 = vmatprep.mubr.bf16.mxu0 %v218
    %274 = vmatmul.mubr.bf16.gmra.mxu0 %v217
    %v275 = vpop.f32.mrf.mxu0
    %v276 = vadd.f32 %v224, %v275
    %v277 = vpop.f32.mrf.mxu0
    %v278 = vadd.f32 %v224, %v277
    %v279 = vpop.f32.mrf.mxu0
    %v280 = vadd.f32 %v229, %v279
    %v281 = vpop.f32.mrf.mxu0
    %v282 = vadd.f32 %v229, %v281
    %283 = vmatprep.mubr.bf16.mxu0 %v220
    %284 = vmatmul.mubr.bf16.gmra.mxu0 %v219
    %v285 = vpop.f32.mrf.mxu0
    %v286 = vadd.f32 %v234, %v285
    %v287 = vpop.f32.mrf.mxu0
    %v288 = vadd.f32 %v234, %v287
    %v289 = vpop.f32.mrf.mxu0
    %v290 = vadd.f32 %v239, %v289
    %v291 = vpop.f32.mrf.mxu0
    %v292 = vadd.f32 %v239, %v291
    %293 = vdwg.mxu0
    %v294 = vmax.f32 %v276, 0.0
    %v295 = vmax.f32 %v278, 0.0
    %v296 = vmax.f32 %v280, 0.0
    %v297 = vmax.f32 %v282, 0.0
    %v298 = vmax.f32 %v286, 0.0
    %v299 = vmax.f32 %v288, 0.0
    %v300 = vmax.f32 %v290, 0.0
    %v301 = vmax.f32 %v292, 0.0
    %v302 = vld [vmem:[%s4] sm:$0xff]
    %v303 = vld [vmem:[%s4 + $0x8] sm:$0xff]
    %v304 = vld [vmem:[%s4 + $0x10] sm:$0xff]
    %v305 = vld [vmem:[%s4 + $0x18] sm:$0xff]
    %v306 = vld [vmem:[%s5] sm:$0xff]
    %v307 = vld [vmem:[%s5 + $0x8] sm:$0xff]
    %v308 = vld [vmem:[%s5 + $0x10] sm:$0xff]
    %v309 = vld [vmem:[%s5 + $0x18] sm:$0xff]
    %v310 = vpack.c.bf16 %v303, %v302
    %v311 = vpack.c.bf16 %v305, %v304
    %v312 = vpack.c.bf16 %v296, %v294
    %v313 = vpack.c.bf16 %v297, %v295
    %v314 = vpack.c.bf16 %v300, %v298
    %v315 = vpack.c.bf16 %v301, %v299
    %vm316 = vcmask 261120
    %v318 = vsel %vm316, %v310, 0
    %v321 = vsel %vm316, %v311, 0
    %323 = vmatprep.subr.bf16.mxu0 0
    %324 = vmatpush1.bf16.msra.mxu0 0
    %325 = vmatprep.subr.bf16.mxu0 0
    %326 = vmatpush1.bf16.msra.mxu0 0
    %327 = vmatprep.subr.bf16.mxu0 0
    %328 = vmatpush1.bf16.msra.mxu0 0
    %329 = vmatprep.subr.bf16.mxu0 0
    %330 = vmatpush1.bf16.msra.mxu0 0
    %331 = vmatprep.subr.bf16.mxu0 0
    %332 = vmatpush1.bf16.msra.mxu0 0
    %333 = vmatprep.subr.bf16.mxu0 0
    %334 = vmatpush1.bf16.msra.mxu0 0
    %335 = vmatprep.subr.bf16.mxu0 %v315
    %336 = vmatpush1.bf16.msra.mxu0 %v314
    %337 = vmatprep.subr.bf16.mxu0 %v313
    %338 = vmatpush1.bf16.msra.mxu0 %v312
    %339 = vmatprep.subr.bf16.mxu0 0
    %340 = vmatpush2.bf16.msra.mxu0 0
    %341 = vmatprep.subr.bf16.mxu0 0
    %342 = vmatpush2.bf16.msra.mxu0 0
    %343 = vmatprep.subr.bf16.mxu0 0
    %344 = vmatpush2.bf16.msra.mxu0 0
    %345 = vmatprep.subr.bf16.mxu0 0
    %346 = vmatpush2.bf16.msra.mxu0 0
    %347 = vmatprep.subr.bf16.mxu0 0
    %348 = vmatpush2.bf16.msra.mxu0 0
    %349 = vmatprep.subr.bf16.mxu0 0
    %350 = vmatpush2.bf16.msra.mxu0 0
    %351 = vmatprep.subr.bf16.mxu0 0
    %352 = vmatpush2.bf16.msra.mxu0 0
    %353 = vmatprep.subr.bf16.mxu0 0
    %354 = vmatpush2.bf16.msra.mxu0 0
    %355 = vmatprep.mubr.bf16.mxu0 0
    %356 = vmatmul.mubr.bf16.gmra.mxu0 %v318
    %v357 = vpop.f32.mrf.mxu0
    %v358 = vadd.f32 0.0, %v357
    %v359 = vpop.f32.mrf.mxu0
    %v360 = vadd.f32 0.0, %v359
    %v361 = vpop.f32.mrf.mxu0
    %v362 = vadd.f32 0.0, %v361
    %v363 = vpop.f32.mrf.mxu0
    %v364 = vadd.f32 0.0, %v363
    %365 = vmatprep.mubr.bf16.mxu0 0
    %366 = vmatmul.mubr.bf16.gmra.mxu0 %v321
    %v367 = vpop.f32.mrf.mxu0
    %v368 = vadd.f32 0.0, %v367
    %v369 = vpop.f32.mrf.mxu0
    %v370 = vadd.f32 0.0, %v369
    %v371 = vpop.f32.mrf.mxu0
    %v372 = vadd.f32 0.0, %v371
    %v373 = vpop.f32.mrf.mxu0
    %v374 = vadd.f32 0.0, %v373
    %375 = vdwg.mxu0
    %v376 = vpack.c.bf16 %v362, %v358
    %v377 = vpack.c.bf16 %v364, %v360
    %v378 = vpack.c.bf16 %v372, %v368
    %v379 = vpack.c.bf16 %v374, %v370
    %381 = vset.pattern.permute.xlu0 0
    %382 = vperm.xlu0 %381, %v306
    %v383 = vpop.permute.xlu0 %382
    %386 = vset.pattern.permute.xlu0 0
    %387 = vperm.xlu0 %386, %v307
    %v388 = vpop.permute.xlu0 %387
    %391 = vset.pattern.permute.xlu0 0
    %392 = vperm.xlu0 %391, %v308
    %v393 = vpop.permute.xlu0 %392
    %396 = vset.pattern.permute.xlu0 0
    %397 = vperm.xlu0 %396, %v309
    %v398 = vpop.permute.xlu0 %397
    %400 = vmatprep.subr.bf16.mxu0 %v124
    %401 = vmatpush1.bf16.msra.mxu0 %v123
    %402 = vmatprep.subr.bf16.mxu0 %v122
    %403 = vmatpush1.bf16.msra.mxu0 %v121
    %404 = vmatprep.subr.bf16.mxu0 %v120
    %405 = vmatpush1.bf16.msra.mxu0 %v119
    %406 = vmatprep.subr.bf16.mxu0 %v118
    %407 = vmatpush1.bf16.msra.mxu0 %v117
    %408 = vmatprep.subr.bf16.mxu0 %v116
    %409 = vmatpush1.bf16.msra.mxu0 %v115
    %410 = vmatprep.subr.bf16.mxu0 %v114
    %411 = vmatpush1.bf16.msra.mxu0 %v113
    %412 = vmatprep.subr.bf16.mxu0 %v112
    %413 = vmatpush1.bf16.msra.mxu0 %v111
    %414 = vmatprep.subr.bf16.mxu0 %v110
    %415 = vmatpush1.bf16.msra.mxu0 %v109
    %416 = vmatprep.subr.bf16.mxu0 %v140
    %417 = vmatpush2.bf16.msra.mxu0 %v139
    %418 = vmatprep.subr.bf16.mxu0 %v138
    %419 = vmatpush2.bf16.msra.mxu0 %v137
    %420 = vmatprep.subr.bf16.mxu0 %v136
    %421 = vmatpush2.bf16.msra.mxu0 %v135
    %422 = vmatprep.subr.bf16.mxu0 %v134
    %423 = vmatpush2.bf16.msra.mxu0 %v133
    %424 = vmatprep.subr.bf16.mxu0 %v132
    %425 = vmatpush2.bf16.msra.mxu0 %v131
    %426 = vmatprep.subr.bf16.mxu0 %v130
    %427 = vmatpush2.bf16.msra.mxu0 %v129
    %428 = vmatprep.subr.bf16.mxu0 %v128
    %429 = vmatpush2.bf16.msra.mxu0 %v127
    %430 = vmatprep.subr.bf16.mxu0 %v126
    %431 = vmatpush2.bf16.msra.mxu0 %v125
    %432 = vmatprep.mubr.bf16.mxu0 %v377
    %433 = vmatmul.mubr.bf16.gmra.mxu0 %v376
    %v434 = vpop.f32.mrf.mxu0
    %v435 = vadd.f32 %v383, %v434
    %v436 = vpop.f32.mrf.mxu0
    %v437 = vadd.f32 %v383, %v436
    %v438 = vpop.f32.mrf.mxu0
    %v439 = vadd.f32 %v388, %v438
    %v440 = vpop.f32.mrf.mxu0
    %v441 = vadd.f32 %v388, %v440
    %442 = vmatprep.mubr.bf16.mxu0 %v379
    %443 = vmatmul.mubr.bf16.gmra.mxu0 %v378
    %v444 = vpop.f32.mrf.mxu0
    %v445 = vadd.f32 %v393, %v444
    %v446 = vpop.f32.mrf.mxu0
    %v447 = vadd.f32 %v393, %v446
    %v448 = vpop.f32.mrf.mxu0
    %v449 = vadd.f32 %v398, %v448
    %v450 = vpop.f32.mrf.mxu0
    %v451 = vadd.f32 %v398, %v450
    %452 = vdwg.mxu0
    %v453 = vmax.f32 %v435, 0.0
    %v454 = vmax.f32 %v437, 0.0
    %v455 = vmax.f32 %v439, 0.0
    %v456 = vmax.f32 %v441, 0.0
    %v457 = vmax.f32 %v445, 0.0
    %v458 = vmax.f32 %v447, 0.0
    %v459 = vmax.f32 %v449, 0.0
    %v460 = vmax.f32 %v451, 0.0
    %v461 = vld [vmem:[%s6] sm:$0xff]
    %v462 = vld [vmem:[%s7] sm:$0xff]
    %v463 = vpack.c.bf16 %v461, %v461
    %v464 = vpack.c.bf16 %v455, %v453
    %v465 = vpack.c.bf16 %v456, %v454
    %v466 = vpack.c.bf16 %v459, %v457
    %v467 = vpack.c.bf16 %v460, %v458
    %v469 = vsel %vm316, %v463, 0
    %471 = vmatprep.subr.bf16.mxu0 0
    %472 = vmatpush1.bf16.msra.mxu0 0
    %473 = vmatprep.subr.bf16.mxu0 0
    %474 = vmatpush1.bf16.msra.mxu0 0
    %475 = vmatprep.subr.bf16.mxu0 0
    %476 = vmatpush1.bf16.msra.mxu0 0
    %477 = vmatprep.subr.bf16.mxu0 0
    %478 = vmatpush1.bf16.msra.mxu0 0
    %479 = vmatprep.subr.bf16.mxu0 0
    %480 = vmatpush1.bf16.msra.mxu0 0
    %481 = vmatprep.subr.bf16.mxu0 0
    %482 = vmatpush1.bf16.msra.mxu0 0
    %483 = vmatprep.subr.bf16.mxu0 %v467
    %484 = vmatpush1.bf16.msra.mxu0 %v466
    %485 = vmatprep.subr.bf16.mxu0 %v465
    %486 = vmatpush1.bf16.msra.mxu0 %v464
    %487 = vmatprep.subr.bf16.mxu0 0
    %488 = vmatpush2.bf16.msra.mxu0 0
    %489 = vmatprep.subr.bf16.mxu0 0
    %490 = vmatpush2.bf16.msra.mxu0 0
    %491 = vmatprep.subr.bf16.mxu0 0
    %492 = vmatpush2.bf16.msra.mxu0 0
    %493 = vmatprep.subr.bf16.mxu0 0
    %494 = vmatpush2.bf16.msra.mxu0 0
    %495 = vmatprep.subr.bf16.mxu0 0
    %496 = vmatpush2.bf16.msra.mxu0 0
    %497 = vmatprep.subr.bf16.mxu0 0
    %498 = vmatpush2.bf16.msra.mxu0 0
    %499 = vmatprep.subr.bf16.mxu0 0
    %500 = vmatpush2.bf16.msra.mxu0 0
    %501 = vmatprep.subr.bf16.mxu0 0
    %502 = vmatpush2.bf16.msra.mxu0 0
    %503 = vmatprep.mubr.bf16.mxu0 0
    %504 = vmatmul.mubr.bf16.gmra.mxu0 %v469
    %v505 = vpop.f32.mrf.mxu0
    %v506 = vadd.f32 0.0, %v505
    %v507 = vpop.f32.mrf.mxu0
    %v508 = vadd.f32 0.0, %v507
    %v509 = vpop.f32.mrf.mxu0
    %v510 = vpop.f32.mrf.mxu0
    %511 = vdwg.mxu0
    %v512 = vpack.c.bf16 %v506, %v506
    %v513 = vpack.c.bf16 %v508, %v508
    %515 = vset.pattern.permute.xlu0 0
    %516 = vperm.xlu0 %515, %v462
    %v517 = vpop.permute.xlu0 %516
    %519 = vmatprep.subr.bf16.mxu0 %v124
    %520 = vmatpush1.bf16.msra.mxu0 %v123
    %521 = vmatprep.subr.bf16.mxu0 %v122
    %522 = vmatpush1.bf16.msra.mxu0 %v121
    %523 = vmatprep.subr.bf16.mxu0 %v120
    %524 = vmatpush1.bf16.msra.mxu0 %v119
    %525 = vmatprep.subr.bf16.mxu0 %v118
    %526 = vmatpush1.bf16.msra.mxu0 %v117
    %527 = vmatprep.subr.bf16.mxu0 %v116
    %528 = vmatpush1.bf16.msra.mxu0 %v115
    %529 = vmatprep.subr.bf16.mxu0 %v114
    %530 = vmatpush1.bf16.msra.mxu0 %v113
    %531 = vmatprep.subr.bf16.mxu0 %v112
    %532 = vmatpush1.bf16.msra.mxu0 %v111
    %533 = vmatprep.subr.bf16.mxu0 %v110
    %534 = vmatpush1.bf16.msra.mxu0 %v109
    %535 = vmatprep.subr.bf16.mxu0 %v140
    %536 = vmatpush2.bf16.msra.mxu0 %v139
    %537 = vmatprep.subr.bf16.mxu0 %v138
    %538 = vmatpush2.bf16.msra.mxu0 %v137
    %539 = vmatprep.subr.bf16.mxu0 %v136
    %540 = vmatpush2.bf16.msra.mxu0 %v135
    %541 = vmatprep.subr.bf16.mxu0 %v134
    %542 = vmatpush2.bf16.msra.mxu0 %v133
    %543 = vmatprep.subr.bf16.mxu0 %v132
    %544 = vmatpush2.bf16.msra.mxu0 %v131
    %545 = vmatprep.subr.bf16.mxu0 %v130
    %546 = vmatpush2.bf16.msra.mxu0 %v129
    %547 = vmatprep.subr.bf16.mxu0 %v128
    %548 = vmatpush2.bf16.msra.mxu0 %v127
    %549 = vmatprep.subr.bf16.mxu0 %v126
    %550 = vmatpush2.bf16.msra.mxu0 %v125
    %551 = vmatprep.mubr.bf16.mxu0 %v513
    %552 = vmatmul.mubr.bf16.gmra.mxu0 %v512
    %v553 = vpop.f32.mrf.mxu0
    %v554 = vadd.f32 %v517, %v553
    %v555 = vpop.f32.mrf.mxu0
    %v556 = vadd.f32 %v517, %v555
    %v557 = vpop.f32.mrf.mxu0
    %v558 = vpop.f32.mrf.mxu0
    %559 = vdwg.mxu0
    %560 = vst [vmem:[#allocation5] sm:$0xff] %v554
    %561 = vst [vmem:[#allocation5 + $0x8] sm:$0xff] %v556
    // Predicated region
    $region38: #{tpu_custom_call.1} parent=1 // pred_check
      _
    $region39: #{tpu_custom_call.1} parent=1 // pred_check_branch
      %563 = sbr.rel (0) target = $region41
    $region40: #{tpu_custom_call.1} parent=1 // pred_region
      %s565 = ssub.s32 256, 256
      %566 = vsyncadd [#allocation4], %s565
      %s568 = sshll.u32 [#allocation5], 4
      %s569 = int_to_ptr.vmem [resolvable:$true] %s568
      %571 = dma.vmem_to_hbm [thread:$0]  %s569, 256, %s8, [#allocation4]
    $region41: #{tpu_custom_call.1} parent=1 // pred_fallthru
      _
    // Predicated region
    $region42: #{tpu_custom_call.1} parent=1 // pred_check
      _
    $region43: #{tpu_custom_call.1} parent=1 // pred_check_branch
      %573 = sbr.rel (0) target = $region45
    $region44: #{tpu_custom_call.1} parent=1 // pred_region
      %574 = dma.done [#allocation4], 256
    $region45: #{tpu_custom_call.1} parent=1 // pred_fallthru
      _
    %575 = vsyncpa [#allocation3], 1
    %576 = vsyncpa [#allocation4], 1

</llo_original>
